<compile_context>
chip_gen: v7x
topology: tpu7x:2x2x1
jax: 0.10.0
libtpu: 0.0.40
codegen_flags: <defaults>
</compile_context>

<pallas_src>
import jax
import jax.numpy as jnp
from jax.experimental import pallas as pl
from jax.experimental.pallas import tpu as pltpu

NEG_SLOPE = 0.01   # F.leaky_relu default negative_slope
LANE = 128
SUBLANE = 8


def _leaky_relu(y):
    return jnp.where(y > 0, y, NEG_SLOPE * y)


def _round_up(n, m):
    return ((n + m - 1) // m) * m


def _pad_to(x, shape):
    return jnp.pad(x, [(0, s - d) for d, s in zip(x.shape, shape)])


# ----------------------------------------------------------------------------
# Kernel: one batch tile of the fused 4-layer MLP.
# Weights (w1..w4) and the packed bias table stay VMEM-resident across steps.
# ----------------------------------------------------------------------------
def flatdense_kernel(x_ref, w1_ref, w2_ref, w3_ref, w4_ref, b_ref, o_ref):
    cdt = w1_ref.dtype
    x = x_ref[...].astype(cdt)          # operand cast (if any) in VMEM, not a wrapper op
    b = b_ref[...]                      # (8, 128) f32; rows 0..3 = b1..b4 (zero-padded)

    h = _leaky_relu(jnp.dot(x, w1_ref[...],
                            preferred_element_type=jnp.float32) + b[0:1, :])
    # dropout (p=0.2) -> identity in eval mode
    h = _leaky_relu(jnp.dot(h.astype(cdt), w2_ref[...],
                            preferred_element_type=jnp.float32) + b[1:2, :])
    h = _leaky_relu(jnp.dot(h.astype(cdt), w3_ref[...],
                            preferred_element_type=jnp.float32) + b[2:3, :])
    out = jnp.dot(h.astype(cdt), w4_ref[...],
                  preferred_element_type=jnp.float32) + b[3:4, :]
    o_ref[...] = out.astype(o_ref.dtype)


# ----------------------------------------------------------------------------
# Parameter handling
# ----------------------------------------------------------------------------
def init_params(key, height, width, n_actions, dtype=jnp.float32):
    """torch.nn.Linear-style init: U(-1/sqrt(fan_in), 1/sqrt(fan_in)).
    Weights stored transposed vs torch (in_dim, out_dim) so forward is x @ W + b."""
    dims = [(height * width, 32), (32, 64), (64, 64), (64, n_actions)]
    params = []
    for (fan_in, fan_out) in dims:
        key, kw, kb = jax.random.split(key, 3)
        bound = 1.0 / jnp.sqrt(jnp.float32(fan_in))
        w = jax.random.uniform(kw, (fan_in, fan_out), dtype, -bound, bound)
        b = jax.random.uniform(kb, (1, fan_out), dtype, -bound, bound)
        params += [w, b]
    return tuple(params)


def _prepare_params(params, compute_dtype):
    """Zero-pad all hidden/output widths to 128 (lane-dense) and pack the four
    biases into a single (8, 128) f32 table (one DMA instead of four)."""
    w1, b1, w2, b2, w3, b3, w4, b4 = params
    D = w1.shape[0]
    w1p = _pad_to(w1, (D, LANE)).astype(compute_dtype)
    w2p = _pad_to(w2, (LANE, LANE)).astype(compute_dtype)
    w3p = _pad_to(w3, (LANE, LANE)).astype(compute_dtype)
    w4p = _pad_to(w4, (LANE, LANE)).astype(compute_dtype)

    bias = jnp.zeros((SUBLANE, LANE), jnp.float32)
    for row, b in enumerate((b1, b2, b3, b4)):
        v = b.reshape(-1).astype(jnp.float32)
        bias = bias.at[row, :v.shape[0]].set(v)
    return w1p, w2p, w3p, w4p, bias


# ----------------------------------------------------------------------------
# Wrapper
# ----------------------------------------------------------------------------
def flatdense_forward(image, features, params, *, tile_b=2048,
                      compute_dtype=jnp.float32, out_dtype=None,
                      return_padded=False):
    """image: (B, H, W) contiguous.  features: unused (API parity with PyTorch).

    compute_dtype=jnp.bfloat16 halves weight traffic and MXU pass count (cast
    happens inside the kernel).  For the biggest win, hand in a bf16 image.
    out_dtype=jnp.bfloat16 halves the output writeback.  return_padded=True
    returns the lane-dense (B, 128) slab (padding columns are exact zeros) and
    skips the trailing column-slice copy entirely.
    """
    del features  # unused by the reference forward()
    B = image.shape[0]
    # Contiguous (B, H, W) -> free reshape under jit; NO dtype cast here (a
    # wrapper-side cast would be a standalone HBM round trip of all of x).
    x = image.reshape(B, -1)
    D = x.shape[1]
    n_actions = params[-2].shape[-1]
    assert n_actions <= LANE, "n_actions must fit a single 128-lane tile"
    if out_dtype is None:
        out_dtype = image.dtype

    w1p, w2p, w3p, w4p, bias = _prepare_params(params, compute_dtype)
    n_out_pad = LANE

    x_item = jnp.dtype(x.dtype).itemsize
    w_item = jnp.dtype(compute_dtype).itemsize
    out_item = jnp.dtype(out_dtype).itemsize

    # --- batch tile sizing -------------------------------------------------
    # ~12 MiB budget for the double-buffered x + out tiles (the only arrays
    # that scale with tile_b); weights are resident and single-buffered.
    row_bytes = 2 * (D * x_item + n_out_pad * out_item)
    tile_b = min(tile_b,
                 max(SUBLANE, (12 * 1024 * 1024) // row_bytes),
                 _round_up(B, SUBLANE))
    # Guarantee >= 2 grid steps when B allows it so v7x's two TensorCores both
    # get work under dimension_semantics=("parallel",).
    if B > SUBLANE:
        tile_b = min(tile_b, _round_up(pl.cdiv(B, 2), SUBLANE))
    tile_b = max(SUBLANE, (tile_b // SUBLANE) * SUBLANE)
    grid = (pl.cdiv(B, tile_b),)   # ragged last block handled by Pallas (no jnp.pad copy)

    weight_bytes = (D + 3 * LANE) * LANE * w_item + SUBLANE * LANE * 4
    est_vmem = tile_b * row_bytes + weight_bytes
    # Explicit scoped-VMEM limit: v5e default is only 16 MiB; keep <= 48 MiB so
    # it also fits v7x's 64 MiB physical per-TC VMEM.
    vmem_limit = int(min(48 * 1024 * 1024, max(32 * 1024 * 1024, 2 * est_vmem)))

    # Weights / bias table: constant index_map (fetched once, resident) and a
    # single buffer -- no point double-buffering something that never changes.
    resident = dict(index_map=lambda i: (0, 0), pipeline_mode=pl.Buffered(1))
    in_specs = [
        pl.BlockSpec((tile_b, D), lambda i: (i, 0)),
        pl.BlockSpec(w1p.shape, **resident),
        pl.BlockSpec(w2p.shape, **resident),
        pl.BlockSpec(w3p.shape, **resident),
        pl.BlockSpec(w4p.shape, **resident),
        pl.BlockSpec(bias.shape, **resident),
    ]
    out_specs = pl.BlockSpec((tile_b, n_out_pad), lambda i: (i, 0))

    cost = pl.CostEstimate(
        flops=2 * B * (D + 3 * LANE) * LANE,
        transcendentals=0,
        bytes_accessed=B * D * x_item + weight_bytes + B * n_out_pad * out_item)

    out_padded = pl.pallas_call(
        flatdense_kernel,
        out_shape=jax.ShapeDtypeStruct((B, n_out_pad), out_dtype),
        grid=grid,
        in_specs=in_specs,
        out_specs=out_specs,
        compiler_params=pltpu.CompilerParams(
            dimension_semantics=("parallel",),
            vmem_limit_bytes=vmem_limit),
        cost_estimate=cost,
    )(x, w1p, w2p, w3p, w4p, bias)

    if return_padded:
        return out_padded                 # (B, 128); cols >= n_actions are exact zeros
    return out_padded[:, :n_actions]


# ----------------------------------------------------------------------------
# Pure-JAX reference (precision="highest" so it tracks true f32 values closely)
# ----------------------------------------------------------------------------
def flatdense_reference(image, features, params):
    del features
    w1, b1, w2, b2, w3, b3, w4, b4 = params
    dot = lambda a, b: jnp.dot(a, b, precision="highest")
    h = image.reshape(image.shape[0], -1)
    h = _leaky_relu(dot(h, w1) + b1)
    h = _leaky_relu(dot(h, w2) + b2)
    h = _leaky_relu(dot(h, w3) + b3)
    return dot(h, w4) + b4


if __name__ == "__main__":
    B, H, W = 2, 16, 16
    N_ACTIONS = 4
    DIM_FEATURES = 3  # unused by forward, present for API parity

    key = jax.random.PRNGKey(0)
    k_img, k_feat, k_par = jax.random.split(key, 3)

    image = jax.random.normal(k_img, (B, H, W), jnp.float32)
    features = jax.random.normal(k_feat, (B, DIM_FEATURES), jnp.float32)
    params = init_params(k_par, H, W, N_ACTIONS)

    out = flatdense_forward(image, features, params)
    out = jax.block_until_ready(out)

    ref = flatdense_reference(image, features, params)
    assert out.shape == (B, N_ACTIONS), out.shape
    # Tolerance accommodates MXU matmul precision differences between the
    # Mosaic kernel and the XLA reference while still catching structural bugs.
    assert jnp.allclose(out, ref, atol=2e-3, rtol=2e-3), "mismatch vs reference"

    print("KERNEL_OK")
</pallas_src>

<mosaic_0001>
module attributes {stable_mosaic.version = 11 : i64} {
  func.func @flatdense_kernel(%arg0: i32, %arg1: memref<8x256xf32, #tpu.memory_space<vmem>>, %arg2: memref<256x128xf32, #tpu.memory_space<vmem>>, %arg3: memref<128x128xf32, #tpu.memory_space<vmem>>, %arg4: memref<128x128xf32, #tpu.memory_space<vmem>>, %arg5: memref<128x128xf32, #tpu.memory_space<vmem>>, %arg6: memref<8x128xf32, #tpu.memory_space<vmem>>, %arg7: memref<8x128xf32, #tpu.memory_space<vmem>>) attributes {dimension_semantics = [#tpu.dimension_semantics<parallel>], iteration_bounds = array<i64: 1>, scalar_prefetch = 0 : i64, scratch_operands = 0 : i64, tpu.core_type = #tpu.core_type<tc>, window_params = [{transform_indices = @transform_0, window_bounds = array<i64: 8, 256>}, {pipeline_mode = #tpu.pipeline_mode<synchronous>, transform_indices = @transform_1, window_bounds = array<i64: 256, 128>}, {pipeline_mode = #tpu.pipeline_mode<synchronous>, transform_indices = @transform_2, window_bounds = array<i64: 128, 128>}, {pipeline_mode = #tpu.pipeline_mode<synchronous>, transform_indices = @transform_3, window_bounds = array<i64: 128, 128>}, {pipeline_mode = #tpu.pipeline_mode<synchronous>, transform_indices = @transform_4, window_bounds = array<i64: 128, 128>}, {pipeline_mode = #tpu.pipeline_mode<synchronous>, transform_indices = @transform_5, window_bounds = array<i64: 8, 128>}, {transform_indices = @transform_6, window_bounds = array<i64: 8, 128>}]} {
    %c0 = arith.constant 0 : index
    %c0_0 = arith.constant 0 : index
    %0 = vector.load %arg1[%c0, %c0_0] : memref<8x256xf32, #tpu.memory_space<vmem>>, vector<8x256xf32>
    %c0_1 = arith.constant 0 : index
    %c0_2 = arith.constant 0 : index
    %1 = vector.load %arg6[%c0_1, %c0_2] : memref<8x128xf32, #tpu.memory_space<vmem>>, vector<8x128xf32>
    %c0_3 = arith.constant 0 : index
    %c0_4 = arith.constant 0 : index
    %2 = vector.load %arg2[%c0_3, %c0_4] : memref<256x128xf32, #tpu.memory_space<vmem>>, vector<256x128xf32>
    %cst = arith.constant dense<0.000000e+00> : vector<8x128xf32>
    %3 = tpu.matmul %0, %2, %cst {dimension_numbers = #tpu.dot_dimension_numbers<[1], [0], [0], [1], [0, 0, 1, 1], [], []>} : vector<8x256xf32>, vector<256x128xf32>, vector<8x128xf32> -> vector<8x128xf32>
    %4 = vector.extract_strided_slice %1 {offsets = [0, 0], sizes = [1, 128], strides = [1, 1]} : vector<8x128xf32> to vector<1x128xf32>
    %5 = vector.broadcast %4 : vector<1x128xf32> to vector<8x128xf32>
    %6 = arith.addf %3, %5 : vector<8x128xf32>
    %cst_5 = arith.constant 0.000000e+00 : f32
    %7 = vector.broadcast %cst_5 : f32 to vector<8x128xf32>
    %8 = arith.cmpf ogt, %6, %7 : vector<8x128xf32>
    %cst_6 = arith.constant 0.00999999977 : f32
    %9 = vector.broadcast %cst_6 : f32 to vector<8x128xf32>
    %10 = arith.mulf %9, %6 : vector<8x128xf32>
    %11 = arith.select %8, %6, %10 : vector<8x128xi1>, vector<8x128xf32>
    %c0_7 = arith.constant 0 : index
    %c0_8 = arith.constant 0 : index
    %12 = vector.load %arg3[%c0_7, %c0_8] : memref<128x128xf32, #tpu.memory_space<vmem>>, vector<128x128xf32>
    %cst_9 = arith.constant dense<0.000000e+00> : vector<8x128xf32>
    %13 = tpu.matmul %11, %12, %cst_9 {dimension_numbers = #tpu.dot_dimension_numbers<[1], [0], [0], [1], [0, 0, 1, 1], [], []>} : vector<8x128xf32>, vector<128x128xf32>, vector<8x128xf32> -> vector<8x128xf32>
    %14 = vector.extract_strided_slice %1 {offsets = [1, 0], sizes = [1, 128], strides = [1, 1]} : vector<8x128xf32> to vector<1x128xf32>
    %15 = vector.broadcast %14 : vector<1x128xf32> to vector<8x128xf32>
    %16 = arith.addf %13, %15 : vector<8x128xf32>
    %cst_10 = arith.constant 0.000000e+00 : f32
    %17 = vector.broadcast %cst_10 : f32 to vector<8x128xf32>
    %18 = arith.cmpf ogt, %16, %17 : vector<8x128xf32>
    %cst_11 = arith.constant 0.00999999977 : f32
    %19 = vector.broadcast %cst_11 : f32 to vector<8x128xf32>
    %20 = arith.mulf %19, %16 : vector<8x128xf32>
    %21 = arith.select %18, %16, %20 : vector<8x128xi1>, vector<8x128xf32>
    %c0_12 = arith.constant 0 : index
    %c0_13 = arith.constant 0 : index
    %22 = vector.load %arg4[%c0_12, %c0_13] : memref<128x128xf32, #tpu.memory_space<vmem>>, vector<128x128xf32>
    %cst_14 = arith.constant dense<0.000000e+00> : vector<8x128xf32>
    %23 = tpu.matmul %21, %22, %cst_14 {dimension_numbers = #tpu.dot_dimension_numbers<[1], [0], [0], [1], [0, 0, 1, 1], [], []>} : vector<8x128xf32>, vector<128x128xf32>, vector<8x128xf32> -> vector<8x128xf32>
    %24 = vector.extract_strided_slice %1 {offsets = [2, 0], sizes = [1, 128], strides = [1, 1]} : vector<8x128xf32> to vector<1x128xf32>
    %25 = vector.broadcast %24 : vector<1x128xf32> to vector<8x128xf32>
    %26 = arith.addf %23, %25 : vector<8x128xf32>
    %cst_15 = arith.constant 0.000000e+00 : f32
    %27 = vector.broadcast %cst_15 : f32 to vector<8x128xf32>
    %28 = arith.cmpf ogt, %26, %27 : vector<8x128xf32>
    %cst_16 = arith.constant 0.00999999977 : f32
    %29 = vector.broadcast %cst_16 : f32 to vector<8x128xf32>
    %30 = arith.mulf %29, %26 : vector<8x128xf32>
    %31 = arith.select %28, %26, %30 : vector<8x128xi1>, vector<8x128xf32>
    %c0_17 = arith.constant 0 : index
    %c0_18 = arith.constant 0 : index
    %32 = vector.load %arg5[%c0_17, %c0_18] : memref<128x128xf32, #tpu.memory_space<vmem>>, vector<128x128xf32>
    %cst_19 = arith.constant dense<0.000000e+00> : vector<8x128xf32>
    %33 = tpu.matmul %31, %32, %cst_19 {dimension_numbers = #tpu.dot_dimension_numbers<[1], [0], [0], [1], [0, 0, 1, 1], [], []>} : vector<8x128xf32>, vector<128x128xf32>, vector<8x128xf32> -> vector<8x128xf32>
    %34 = vector.extract_strided_slice %1 {offsets = [3, 0], sizes = [1, 128], strides = [1, 1]} : vector<8x128xf32> to vector<1x128xf32>
    %35 = vector.broadcast %34 : vector<1x128xf32> to vector<8x128xf32>
    %36 = arith.addf %33, %35 : vector<8x128xf32>
    %c0_20 = arith.constant 0 : index
    %c0_21 = arith.constant 0 : index
    %37 = vector.load %arg7[%c0_20, %c0_21] : memref<8x128xf32, #tpu.memory_space<vmem>>, vector<8x128xf32>
    tpu.vector_store %arg7[%c0_20, %c0_21], %36 {strides = array<i32>} : memref<8x128xf32, #tpu.memory_space<vmem>>, vector<8x128xf32>,
    return
  }
  func.func @transform_0(%arg0: i32) -> (i32, i32) {
    %c0_i32 = arith.constant 0 : i32
    %c0_i32_0 = arith.constant 0 : i32
    return %arg0, %c0_i32 : i32, i32
  }
  func.func @transform_1(%arg0: i32) -> (i32, i32) {
    %c0_i32 = arith.constant 0 : i32
    %c0_i32_0 = arith.constant 0 : i32
    %c0_i32_1 = arith.constant 0 : i32
    return %c0_i32, %c0_i32_0 : i32, i32
  }
  func.func @transform_2(%arg0: i32) -> (i32, i32) {
    %c0_i32 = arith.constant 0 : i32
    %c0_i32_0 = arith.constant 0 : i32
    %c0_i32_1 = arith.constant 0 : i32
    return %c0_i32, %c0_i32_0 : i32, i32
  }
  func.func @transform_3(%arg0: i32) -> (i32, i32) {
    %c0_i32 = arith.constant 0 : i32
    %c0_i32_0 = arith.constant 0 : i32
    %c0_i32_1 = arith.constant 0 : i32
    return %c0_i32, %c0_i32_0 : i32, i32
  }
  func.func @transform_4(%arg0: i32) -> (i32, i32) {
    %c0_i32 = arith.constant 0 : i32
    %c0_i32_0 = arith.constant 0 : i32
    %c0_i32_1 = arith.constant 0 : i32
    return %c0_i32, %c0_i32_0 : i32, i32
  }
  func.func @transform_5(%arg0: i32) -> (i32, i32) {
    %c0_i32 = arith.constant 0 : i32
    %c0_i32_0 = arith.constant 0 : i32
    %c0_i32_1 = arith.constant 0 : i32
    return %c0_i32, %c0_i32_0 : i32, i32
  }
  func.func @transform_6(%arg0: i32) -> (i32, i32) {
    %c0_i32 = arith.constant 0 : i32
    %c0_i32_0 = arith.constant 0 : i32
    return %arg0, %c0_i32 : i32, i32
  }
}

</mosaic_0001>

<llo_original>
// kernel: tpu_custom_call.1
$region0: #{tpu_custom_call.1}
  #allocation0 [shape = 'u32[]', space=smem, size = 0x4, offset = 0x4, fixed_abs, tag = 'smem constant byte address 0x4 - core index']
  #allocation1 [shape = 'u32[144,128]{1,0:T(1,128)}', space=vmem, size = 0x12000, scoped, tag = 'internal scratch']
  %s0 = inlined_call_operand.hbm [shape: f32[2,256], index: 0, kind: input, shape index: {}]
  %s1 = inlined_call_operand.hbm [shape: f32[256,128], index: 1, kind: input, shape index: {}]
  %s2 = inlined_call_operand.hbm [shape: f32[128,128], index: 2, kind: input, shape index: {}]
  %s3 = inlined_call_operand.hbm [shape: f32[128,128], index: 3, kind: input, shape index: {}]
  %s4 = inlined_call_operand.hbm [shape: f32[128,128], index: 4, kind: input, shape index: {}]
  %s5 = inlined_call_operand.vmem [shape: f32[8,128], index: 5, kind: input, shape index: {}]
  %s6 = inlined_call_operand.hbm [shape: f32[2,128], index: 6, kind: output, shape index: {}]
  %s7 = sld [smem:[#allocation0]]
  $region54: #{tpu_custom_call.1} parent=0
    _
  %s9 = ssub.s32 1, %s7
  %s10 = scalar_select 0, %s9, %s7
  $region1: #{tpu_custom_call.1} parent=0
    #allocation2 [shape = 'u8[8192]{0}', space=vmem, size = 0x2000, scoped, tag = 'input window, operand 0, single buffered']
    #allocation3 [shape = 's32[1]{0}', space=sflag, size = 0x4, scoped, tag = 'scoped memory for tpu_custom_call.1']
    #allocation4 [shape = 's32[1]{0}', space=sflag, size = 0x4, scoped, tag = 'scoped memory for tpu_custom_call.1']
    #allocation5 [shape = 'u8[131072]{0}', space=vmem, size = 0x20000, scoped, tag = 'input window, operand 1, single buffered']
    #allocation6 [shape = 's32[1]{0}', space=sflag, size = 0x4, scoped, tag = 'scoped memory for tpu_custom_call.1']
    #allocation7 [shape = 'u8[65536]{0}', space=vmem, size = 0x10000, scoped, tag = 'input window, operand 2, single buffered']
    #allocation8 [shape = 'u8[65536]{0}', space=vmem, size = 0x10000, scoped, tag = 'input window, operand 3, single buffered']
    #allocation9 [shape = 's32[1]{0}', space=sflag, size = 0x4, scoped, tag = 'scoped memory for tpu_custom_call.1']
    #allocation10 [shape = 'u8[65536]{0}', space=vmem, size = 0x10000, scoped, tag = 'input window, operand 4, single buffered']
    #allocation11 [shape = 'u8[4096]{0}', space=vmem, size = 0x1000, scoped, tag = 'output window, operand 0, single buffered']
    %11 = vsyncpa [#allocation3], 0
    %12 = vsyncpa [#allocation6], 0
    %13 = vsyncpa [#allocation9], 0
    %14 = vsyncpa [#allocation4], 0
    // Predicated region
    $region2: #{tpu_custom_call.1} parent=1 // pred_check
      _
    $region3: #{tpu_custom_call.1} parent=1 // pred_check_branch
      %16 = sbr.rel (0) target = $region5
    $region4: #{tpu_custom_call.1} parent=1 // pred_region
      %s18 = ssub.s32 256, 64
      %19 = vsyncadd [#allocation3], %s18
      %s20 = sshll.u32 [#allocation2], 4
      %s21 = int_to_ptr.vmem [resolvable:$true] %s20
      %26 = dma.hbm_to_vmem [thread:$0]  %s0, 64, %s21, [#allocation3], 64, 64, 4
    $region5: #{tpu_custom_call.1} parent=1 // pred_fallthru
      _
    // Predicated region
    $region6: #{tpu_custom_call.1} parent=1 // pred_check
      _
    $region7: #{tpu_custom_call.1} parent=1 // pred_check_branch
      %28 = sbr.rel (0) target = $region9
    $region8: #{tpu_custom_call.1} parent=1 // pred_region
      %s30 = ssub.s32 4096, 4096
      %31 = vsyncadd [#allocation6], %s30
      %s32 = sshll.u32 [#allocation5], 4
      %s33 = int_to_ptr.vmem [resolvable:$true] %s32
      %38 = dma.hbm_to_vmem [thread:$0]  %s1, 4096, %s33, [#allocation6], 128, 128, 8
    $region9: #{tpu_custom_call.1} parent=1 // pred_fallthru
      _
    // Predicated region
    $region10: #{tpu_custom_call.1} parent=1 // pred_check
      _
    $region11: #{tpu_custom_call.1} parent=1 // pred_check_branch
      %40 = sbr.rel (0) target = $region13
    $region12: #{tpu_custom_call.1} parent=1 // pred_region
      %s42 = ssub.s32 2048, 2048
      %43 = vsyncadd [#allocation6], %s42
      %s44 = sshll.u32 [#allocation7], 4
      %s45 = int_to_ptr.vmem [resolvable:$true] %s44
      %50 = dma.hbm_to_vmem [thread:$0]  %s2, 2048, %s45, [#allocation6], 128, 128, 8
    $region13: #{tpu_custom_call.1} parent=1 // pred_fallthru
      _
    // Predicated region
    $region14: #{tpu_custom_call.1} parent=1 // pred_check
      _
    $region15: #{tpu_custom_call.1} parent=1 // pred_check_branch
      %52 = sbr.rel (0) target = $region17
    $region16: #{tpu_custom_call.1} parent=1 // pred_region
      %s54 = ssub.s32 2048, 2048
      %55 = vsyncadd [#allocation9], %s54
      %s56 = sshll.u32 [#allocation8], 4
      %s57 = int_to_ptr.vmem [resolvable:$true] %s56
      %62 = dma.hbm_to_vmem [thread:$0]  %s3, 2048, %s57, [#allocation9], 128, 128, 8
    $region17: #{tpu_custom_call.1} parent=1 // pred_fallthru
      _
    // Predicated region
    $region18: #{tpu_custom_call.1} parent=1 // pred_check
      _
    $region19: #{tpu_custom_call.1} parent=1 // pred_check_branch
      %64 = sbr.rel (0) target = $region21
    $region20: #{tpu_custom_call.1} parent=1 // pred_region
      %s66 = ssub.s32 2048, 2048
      %67 = vsyncadd [#allocation9], %s66
      %s68 = sshll.u32 [#allocation10], 4
      %s69 = int_to_ptr.vmem [resolvable:$true] %s68
      %74 = dma.hbm_to_vmem [thread:$0]  %s4, 2048, %s69, [#allocation9], 128, 128, 8
    $region21: #{tpu_custom_call.1} parent=1 // pred_fallthru
      _
    // Predicated region
    $region22: #{tpu_custom_call.1} parent=1 // pred_check
      _
    $region23: #{tpu_custom_call.1} parent=1 // pred_check_branch
      %76 = sbr.rel (0) target = $region25
    $region24: #{tpu_custom_call.1} parent=1 // pred_region
      _
    $region25: #{tpu_custom_call.1} parent=1 // pred_fallthru
      _
    // Predicated region
    $region26: #{tpu_custom_call.1} parent=1 // pred_check
      _
    $region27: #{tpu_custom_call.1} parent=1 // pred_check_branch
      %78 = sbr.rel (0) target = $region29
    $region28: #{tpu_custom_call.1} parent=1 // pred_region
      %79 = dma.done [#allocation3], 256
    $region29: #{tpu_custom_call.1} parent=1 // pred_fallthru
      _
    // Predicated region
    $region30: #{tpu_custom_call.1} parent=1 // pred_check
      _
    $region31: #{tpu_custom_call.1} parent=1 // pred_check_branch
      %81 = sbr.rel (0) target = $region33
    $region32: #{tpu_custom_call.1} parent=1 // pred_region
      %82 = dma.done [#allocation6], 4096
    $region33: #{tpu_custom_call.1} parent=1 // pred_fallthru
      _
    // Predicated region
    $region34: #{tpu_custom_call.1} parent=1 // pred_check
      _
    $region35: #{tpu_custom_call.1} parent=1 // pred_check_branch
      %84 = sbr.rel (0) target = $region37
    $region36: #{tpu_custom_call.1} parent=1 // pred_region
      %85 = dma.done [#allocation6], 2048
    $region37: #{tpu_custom_call.1} parent=1 // pred_fallthru
      _
    // Predicated region
    $region38: #{tpu_custom_call.1} parent=1 // pred_check
      _
    $region39: #{tpu_custom_call.1} parent=1 // pred_check_branch
      %87 = sbr.rel (0) target = $region41
    $region40: #{tpu_custom_call.1} parent=1 // pred_region
      %88 = dma.done [#allocation9], 2048
    $region41: #{tpu_custom_call.1} parent=1 // pred_fallthru
      _
    // Predicated region
    $region42: #{tpu_custom_call.1} parent=1 // pred_check
      _
    $region43: #{tpu_custom_call.1} parent=1 // pred_check_branch
      %90 = sbr.rel (0) target = $region45
    $region44: #{tpu_custom_call.1} parent=1 // pred_region
      %91 = dma.done [#allocation9], 2048
    $region45: #{tpu_custom_call.1} parent=1 // pred_fallthru
      _
    %v92 = vld [vmem:[#allocation2] sm:$0xf]
    %v93 = vld [vmem:[#allocation2 + $0x4] sm:$0xf]
    %v94 = vld [vmem:[#allocation2 + $0x8] sm:$0xf]
    %v95 = vld [vmem:[#allocation2 + $0xc] sm:$0xf]
    %v96 = vld [vmem:[%s5] sm:$0xff]
    %v97 = vld [vmem:[#allocation5] sm:$0xff]
    %v98 = vld [vmem:[#allocation5 + $0x8] sm:$0xff]
    %v99 = vld [vmem:[#allocation5 + $0x10] sm:$0xff]
    %v100 = vld [vmem:[#allocation5 + $0x18] sm:$0xff]
    %v101 = vld [vmem:[#allocation5 + $0x20] sm:$0xff]
    %v102 = vld [vmem:[#allocation5 + $0x28] sm:$0xff]
    %v103 = vld [vmem:[#allocation5 + $0x30] sm:$0xff]
    %v104 = vld [vmem:[#allocation5 + $0x38] sm:$0xff]
    %v105 = vld [vmem:[#allocation5 + $0x40] sm:$0xff]
    %v106 = vld [vmem:[#allocation5 + $0x48] sm:$0xff]
    %v107 = vld [vmem:[#allocation5 + $0x50] sm:$0xff]
    %v108 = vld [vmem:[#allocation5 + $0x58] sm:$0xff]
    %v109 = vld [vmem:[#allocation5 + $0x60] sm:$0xff]
    %v110 = vld [vmem:[#allocation5 + $0x68] sm:$0xff]
    %v111 = vld [vmem:[#allocation5 + $0x70] sm:$0xff]
    %v112 = vld [vmem:[#allocation5 + $0x78] sm:$0xff]
    %v113 = vld [vmem:[#allocation5 + $0x80] sm:$0xff]
    %v114 = vld [vmem:[#allocation5 + $0x88] sm:$0xff]
    %v115 = vld [vmem:[#allocation5 + $0x90] sm:$0xff]
    %v116 = vld [vmem:[#allocation5 + $0x98] sm:$0xff]
    %v117 = vld [vmem:[#allocation5 + $0xa0] sm:$0xff]
    %v118 = vld [vmem:[#allocation5 + $0xa8] sm:$0xff]
    %v119 = vld [vmem:[#allocation5 + $0xb0] sm:$0xff]
    %v120 = vld [vmem:[#allocation5 + $0xb8] sm:$0xff]
    %v121 = vld [vmem:[#allocation5 + $0xc0] sm:$0xff]
    %v122 = vld [vmem:[#allocation5 + $0xc8] sm:$0xff]
    %v123 = vld [vmem:[#allocation5 + $0xd0] sm:$0xff]
    %v124 = vld [vmem:[#allocation5 + $0xd8] sm:$0xff]
    %v125 = vld [vmem:[#allocation5 + $0xe0] sm:$0xff]
    %v126 = vld [vmem:[#allocation5 + $0xe8] sm:$0xff]
    %v127 = vld [vmem:[#allocation5 + $0xf0] sm:$0xff]
    %v128 = vld [vmem:[#allocation5 + $0xf8] sm:$0xff]
    %v129 = vlaneseq
    %v130 = vshrl.u32 %v129, 7
    %v131 = vsub.s32 0, %v130
    %v132 = vrot.slane %v96, %v131
    %v137 = vcombine.low %v92, %v93
    %v138 = vcombine.low %v94, %v95
    %v140 = vunpack.c.l.s4 1983009808
    %v141 = vunpack.c.0.s8 %v140
    %v142 = vlaneseq
    %v143 = vshrl.u32 %v142, 7
    %v144 = vsub.s32 %v141, %v143
    %v145 = vrot.slane %v137, %v144
    %v147 = vunpack.c.l.s4 1983009808
    %v148 = vunpack.c.0.s8 %v147
    %v149 = vlaneseq
    %v150 = vshrl.u32 %v149, 7
    %v151 = vsub.s32 %v148, %v150
    %v152 = vrot.slane %v138, %v151
    %v153 = vcombine.low %v145, %v152
    %v154 = vcombine.high %v145, %v152
    %157 = vmatprep.subr.mxu0 0.0
    %158 = vmatpush1.msra.mxu0 %v97
    %159 = vmatprep.subr.mxu0 0.0
    %160 = vmatpush1.msra.mxu0 %v98
    %161 = vmatprep.subr.mxu0 0.0
    %162 = vmatpush1.msra.mxu0 %v99
    %163 = vmatprep.subr.mxu0 0.0
    %164 = vmatpush1.msra.mxu0 %v100
    %165 = vmatprep.subr.mxu0 0.0
    %166 = vmatpush1.msra.mxu0 %v101
    %167 = vmatprep.subr.mxu0 0.0
    %168 = vmatpush1.msra.mxu0 %v102
    %169 = vmatprep.subr.mxu0 0.0
    %170 = vmatpush1.msra.mxu0 %v103
    %171 = vmatprep.subr.mxu0 0.0
    %172 = vmatpush1.msra.mxu0 %v104
    %173 = vmatprep.subr.mxu0 0.0
    %174 = vmatpush1.msra.mxu0 %v105
    %175 = vmatprep.subr.mxu0 0.0
    %176 = vmatpush1.msra.mxu0 %v106
    %177 = vmatprep.subr.mxu0 0.0
    %178 = vmatpush1.msra.mxu0 %v107
    %179 = vmatprep.subr.mxu0 0.0
    %180 = vmatpush1.msra.mxu0 %v108
    %181 = vmatprep.subr.mxu0 0.0
    %182 = vmatpush1.msra.mxu0 %v109
    %183 = vmatprep.subr.mxu0 0.0
    %184 = vmatpush1.msra.mxu0 %v110
    %185 = vmatprep.subr.mxu0 0.0
    %186 = vmatpush1.msra.mxu0 %v111
    %187 = vmatprep.subr.mxu0 0.0
    %188 = vmatpush1.msra.mxu0 %v112
    %189 = vmatprep.subr.mxu0 0.0
    %190 = vmatpush1.msra.mxu0 %v113
    %191 = vmatprep.subr.mxu0 0.0
    %192 = vmatpush1.msra.mxu0 %v114
    %193 = vmatprep.subr.mxu0 0.0
    %194 = vmatpush1.msra.mxu0 %v115
    %195 = vmatprep.subr.mxu0 0.0
    %196 = vmatpush1.msra.mxu0 %v116
    %197 = vmatprep.subr.mxu0 0.0
    %198 = vmatpush1.msra.mxu0 %v117
    %199 = vmatprep.subr.mxu0 0.0
    %200 = vmatpush1.msra.mxu0 %v118
    %201 = vmatprep.subr.mxu0 0.0
    %202 = vmatpush1.msra.mxu0 %v119
    %203 = vmatprep.subr.mxu0 0.0
    %204 = vmatpush1.msra.mxu0 %v120
    %205 = vmatprep.subr.mxu0 0.0
    %206 = vmatpush1.msra.mxu0 %v121
    %207 = vmatprep.subr.mxu0 0.0
    %208 = vmatpush1.msra.mxu0 %v122
    %209 = vmatprep.subr.mxu0 0.0
    %210 = vmatpush1.msra.mxu0 %v123
    %211 = vmatprep.subr.mxu0 0.0
    %212 = vmatpush1.msra.mxu0 %v124
    %213 = vmatprep.subr.mxu0 0.0
    %214 = vmatpush1.msra.mxu0 %v125
    %215 = vmatprep.subr.mxu0 0.0
    %216 = vmatpush1.msra.mxu0 %v126
    %217 = vmatprep.subr.mxu0 0.0
    %218 = vmatpush1.msra.mxu0 %v127
    %219 = vmatprep.subr.mxu0 0.0
    %220 = vmatpush1.msra.mxu0 %v128
    %221 = vmatprep.mubr.f32.mxu0 %v154
    %222 = vmatmul.mubr.f32.gmra.mrb[0].mxu0 %v153
    %v223 = vpop.f32.mrb[0].mxu0
    %v224 = vadd.f32 %v132, %v223
    %v225 = vpop.f32.mrb[0].mxu0
    %226 = vdwg.mxu0
    %vm227 = vcmp.gt.f32.partialorder %v224, 0.0
    %v228 = vmul.f32 %v224, 0.01
    %v229 = vsel %vm227, %v224, %v228
    %v230 = vld [vmem:[#allocation7] sm:$0xff]
    %v231 = vld [vmem:[#allocation7 + $0x8] sm:$0xff]
    %v232 = vld [vmem:[#allocation7 + $0x10] sm:$0xff]
    %v233 = vld [vmem:[#allocation7 + $0x18] sm:$0xff]
    %v234 = vld [vmem:[#allocation7 + $0x20] sm:$0xff]
    %v235 = vld [vmem:[#allocation7 + $0x28] sm:$0xff]
    %v236 = vld [vmem:[#allocation7 + $0x30] sm:$0xff]
    %v237 = vld [vmem:[#allocation7 + $0x38] sm:$0xff]
    %v238 = vld [vmem:[#allocation7 + $0x40] sm:$0xff]
    %v239 = vld [vmem:[#allocation7 + $0x48] sm:$0xff]
    %v240 = vld [vmem:[#allocation7 + $0x50] sm:$0xff]
    %v241 = vld [vmem:[#allocation7 + $0x58] sm:$0xff]
    %v242 = vld [vmem:[#allocation7 + $0x60] sm:$0xff]
    %v243 = vld [vmem:[#allocation7 + $0x68] sm:$0xff]
    %v244 = vld [vmem:[#allocation7 + $0x70] sm:$0xff]
    %v245 = vld [vmem:[#allocation7 + $0x78] sm:$0xff]
    %v246 = vlaneseq
    %v247 = vshrl.u32 %v246, 7
    %v248 = vsub.s32 1, %v247
    %v249 = vrot.slane %v96, %v248
    %250 = vmatprep.subr.mxu0 0.0
    %251 = vmatpush1.msra.mxu0 %v230
    %252 = vmatprep.subr.mxu0 0.0
    %253 = vmatpush1.msra.mxu0 %v231
    %254 = vmatprep.subr.mxu0 0.0
    %255 = vmatpush1.msra.mxu0 %v232
    %256 = vmatprep.subr.mxu0 0.0
    %257 = vmatpush1.msra.mxu0 %v233
    %258 = vmatprep.subr.mxu0 0.0
    %259 = vmatpush1.msra.mxu0 %v234
    %260 = vmatprep.subr.mxu0 0.0
    %261 = vmatpush1.msra.mxu0 %v235
    %262 = vmatprep.subr.mxu0 0.0
    %263 = vmatpush1.msra.mxu0 %v236
    %264 = vmatprep.subr.mxu0 0.0
    %265 = vmatpush1.msra.mxu0 %v237
    %266 = vmatprep.subr.mxu0 0.0
    %267 = vmatpush1.msra.mxu0 %v238
    %268 = vmatprep.subr.mxu0 0.0
    %269 = vmatpush1.msra.mxu0 %v239
    %270 = vmatprep.subr.mxu0 0.0
    %271 = vmatpush1.msra.mxu0 %v240
    %272 = vmatprep.subr.mxu0 0.0
    %273 = vmatpush1.msra.mxu0 %v241
    %274 = vmatprep.subr.mxu0 0.0
    %275 = vmatpush1.msra.mxu0 %v242
    %276 = vmatprep.subr.mxu0 0.0
    %277 = vmatpush1.msra.mxu0 %v243
    %278 = vmatprep.subr.mxu0 0.0
    %279 = vmatpush1.msra.mxu0 %v244
    %280 = vmatprep.subr.mxu0 0.0
    %281 = vmatpush1.msra.mxu0 %v245
    %282 = vmatprep.subr.mxu0 0.0
    %283 = vmatpush1.msra.mxu0 0.0
    %284 = vmatprep.subr.mxu0 0.0
    %285 = vmatpush1.msra.mxu0 0.0
    %286 = vmatprep.subr.mxu0 0.0
    %287 = vmatpush1.msra.mxu0 0.0
    %288 = vmatprep.subr.mxu0 0.0
    %289 = vmatpush1.msra.mxu0 0.0
    %290 = vmatprep.subr.mxu0 0.0
    %291 = vmatpush1.msra.mxu0 0.0
    %292 = vmatprep.subr.mxu0 0.0
    %293 = vmatpush1.msra.mxu0 0.0
    %294 = vmatprep.subr.mxu0 0.0
    %295 = vmatpush1.msra.mxu0 0.0
    %296 = vmatprep.subr.mxu0 0.0
    %297 = vmatpush1.msra.mxu0 0.0
    %298 = vmatprep.subr.mxu0 0.0
    %299 = vmatpush1.msra.mxu0 0.0
    %300 = vmatprep.subr.mxu0 0.0
    %301 = vmatpush1.msra.mxu0 0.0
    %302 = vmatprep.subr.mxu0 0.0
    %303 = vmatpush1.msra.mxu0 0.0
    %304 = vmatprep.subr.mxu0 0.0
    %305 = vmatpush1.msra.mxu0 0.0
    %306 = vmatprep.subr.mxu0 0.0
    %307 = vmatpush1.msra.mxu0 0.0
    %308 = vmatprep.subr.mxu0 0.0
    %309 = vmatpush1.msra.mxu0 0.0
    %310 = vmatprep.subr.mxu0 0.0
    %311 = vmatpush1.msra.mxu0 0.0
    %312 = vmatprep.subr.mxu0 0.0
    %313 = vmatpush1.msra.mxu0 0.0
    %314 = vmatprep.mubr.f32.mxu0 0.0
    %315 = vmatmul.mubr.f32.gmra.mrb[0].mxu0 %v229
    %v316 = vpop.f32.mrb[0].mxu0
    %v317 = vadd.f32 %v249, %v316
    %v318 = vpop.f32.mrb[0].mxu0
    %319 = vdwg.mxu0
    %vm320 = vcmp.gt.f32.partialorder %v317, 0.0
    %v321 = vmul.f32 %v317, 0.01
    %v322 = vsel %vm320, %v317, %v321
    %v323 = vld [vmem:[#allocation8] sm:$0xff]
    %v324 = vld [vmem:[#allocation8 + $0x8] sm:$0xff]
    %v325 = vld [vmem:[#allocation8 + $0x10] sm:$0xff]
    %v326 = vld [vmem:[#allocation8 + $0x18] sm:$0xff]
    %v327 = vld [vmem:[#allocation8 + $0x20] sm:$0xff]
    %v328 = vld [vmem:[#allocation8 + $0x28] sm:$0xff]
    %v329 = vld [vmem:[#allocation8 + $0x30] sm:$0xff]
    %v330 = vld [vmem:[#allocation8 + $0x38] sm:$0xff]
    %v331 = vld [vmem:[#allocation8 + $0x40] sm:$0xff]
    %v332 = vld [vmem:[#allocation8 + $0x48] sm:$0xff]
    %v333 = vld [vmem:[#allocation8 + $0x50] sm:$0xff]
    %v334 = vld [vmem:[#allocation8 + $0x58] sm:$0xff]
    %v335 = vld [vmem:[#allocation8 + $0x60] sm:$0xff]
    %v336 = vld [vmem:[#allocation8 + $0x68] sm:$0xff]
    %v337 = vld [vmem:[#allocation8 + $0x70] sm:$0xff]
    %v338 = vld [vmem:[#allocation8 + $0x78] sm:$0xff]
    %v339 = vlaneseq
    %v340 = vshrl.u32 %v339, 7
    %v341 = vsub.s32 2, %v340
    %v342 = vrot.slane %v96, %v341
    %343 = vmatprep.subr.mxu0 0.0
    %344 = vmatpush1.msra.mxu0 %v323
    %345 = vmatprep.subr.mxu0 0.0
    %346 = vmatpush1.msra.mxu0 %v324
    %347 = vmatprep.subr.mxu0 0.0
    %348 = vmatpush1.msra.mxu0 %v325
    %349 = vmatprep.subr.mxu0 0.0
    %350 = vmatpush1.msra.mxu0 %v326
    %351 = vmatprep.subr.mxu0 0.0
    %352 = vmatpush1.msra.mxu0 %v327
    %353 = vmatprep.subr.mxu0 0.0
    %354 = vmatpush1.msra.mxu0 %v328
    %355 = vmatprep.subr.mxu0 0.0
    %356 = vmatpush1.msra.mxu0 %v329
    %357 = vmatprep.subr.mxu0 0.0
    %358 = vmatpush1.msra.mxu0 %v330
    %359 = vmatprep.subr.mxu0 0.0
    %360 = vmatpush1.msra.mxu0 %v331
    %361 = vmatprep.subr.mxu0 0.0
    %362 = vmatpush1.msra.mxu0 %v332
    %363 = vmatprep.subr.mxu0 0.0
    %364 = vmatpush1.msra.mxu0 %v333
    %365 = vmatprep.subr.mxu0 0.0
    %366 = vmatpush1.msra.mxu0 %v334
    %367 = vmatprep.subr.mxu0 0.0
    %368 = vmatpush1.msra.mxu0 %v335
    %369 = vmatprep.subr.mxu0 0.0
    %370 = vmatpush1.msra.mxu0 %v336
    %371 = vmatprep.subr.mxu0 0.0
    %372 = vmatpush1.msra.mxu0 %v337
    %373 = vmatprep.subr.mxu0 0.0
    %374 = vmatpush1.msra.mxu0 %v338
    %375 = vmatprep.subr.mxu0 0.0
    %376 = vmatpush1.msra.mxu0 0.0
    %377 = vmatprep.subr.mxu0 0.0
    %378 = vmatpush1.msra.mxu0 0.0
    %379 = vmatprep.subr.mxu0 0.0
    %380 = vmatpush1.msra.mxu0 0.0
    %381 = vmatprep.subr.mxu0 0.0
    %382 = vmatpush1.msra.mxu0 0.0
    %383 = vmatprep.subr.mxu0 0.0
    %384 = vmatpush1.msra.mxu0 0.0
    %385 = vmatprep.subr.mxu0 0.0
    %386 = vmatpush1.msra.mxu0 0.0
    %387 = vmatprep.subr.mxu0 0.0
    %388 = vmatpush1.msra.mxu0 0.0
    %389 = vmatprep.subr.mxu0 0.0
    %390 = vmatpush1.msra.mxu0 0.0
    %391 = vmatprep.subr.mxu0 0.0
    %392 = vmatpush1.msra.mxu0 0.0
    %393 = vmatprep.subr.mxu0 0.0
    %394 = vmatpush1.msra.mxu0 0.0
    %395 = vmatprep.subr.mxu0 0.0
    %396 = vmatpush1.msra.mxu0 0.0
    %397 = vmatprep.subr.mxu0 0.0
    %398 = vmatpush1.msra.mxu0 0.0
    %399 = vmatprep.subr.mxu0 0.0
    %400 = vmatpush1.msra.mxu0 0.0
    %401 = vmatprep.subr.mxu0 0.0
    %402 = vmatpush1.msra.mxu0 0.0
    %403 = vmatprep.subr.mxu0 0.0
    %404 = vmatpush1.msra.mxu0 0.0
    %405 = vmatprep.subr.mxu0 0.0
    %406 = vmatpush1.msra.mxu0 0.0
    %407 = vmatprep.mubr.f32.mxu0 0.0
    %408 = vmatmul.mubr.f32.gmra.mrb[0].mxu0 %v322
    %v409 = vpop.f32.mrb[0].mxu0
    %v410 = vadd.f32 %v342, %v409
    %v411 = vpop.f32.mrb[0].mxu0
    %412 = vdwg.mxu0
    %vm413 = vcmp.gt.f32.partialorder %v410, 0.0
    %v414 = vmul.f32 %v410, 0.01
    %v415 = vsel %vm413, %v410, %v414
    %v416 = vld [vmem:[#allocation10] sm:$0xff]
    %v417 = vld [vmem:[#allocation10 + $0x8] sm:$0xff]
    %v418 = vld [vmem:[#allocation10 + $0x10] sm:$0xff]
    %v419 = vld [vmem:[#allocation10 + $0x18] sm:$0xff]
    %v420 = vld [vmem:[#allocation10 + $0x20] sm:$0xff]
    %v421 = vld [vmem:[#allocation10 + $0x28] sm:$0xff]
    %v422 = vld [vmem:[#allocation10 + $0x30] sm:$0xff]
    %v423 = vld [vmem:[#allocation10 + $0x38] sm:$0xff]
    %v424 = vld [vmem:[#allocation10 + $0x40] sm:$0xff]
    %v425 = vld [vmem:[#allocation10 + $0x48] sm:$0xff]
    %v426 = vld [vmem:[#allocation10 + $0x50] sm:$0xff]
    %v427 = vld [vmem:[#allocation10 + $0x58] sm:$0xff]
    %v428 = vld [vmem:[#allocation10 + $0x60] sm:$0xff]
    %v429 = vld [vmem:[#allocation10 + $0x68] sm:$0xff]
    %v430 = vld [vmem:[#allocation10 + $0x70] sm:$0xff]
    %v431 = vld [vmem:[#allocation10 + $0x78] sm:$0xff]
    %v432 = vlaneseq
    %v433 = vshrl.u32 %v432, 7
    %v434 = vsub.s32 3, %v433
    %v435 = vrot.slane %v96, %v434
    %436 = vmatprep.subr.mxu0 0.0
    %437 = vmatpush1.msra.mxu0 %v416
    %438 = vmatprep.subr.mxu0 0.0
    %439 = vmatpush1.msra.mxu0 %v417
    %440 = vmatprep.subr.mxu0 0.0
    %441 = vmatpush1.msra.mxu0 %v418
    %442 = vmatprep.subr.mxu0 0.0
    %443 = vmatpush1.msra.mxu0 %v419
    %444 = vmatprep.subr.mxu0 0.0
    %445 = vmatpush1.msra.mxu0 %v420
    %446 = vmatprep.subr.mxu0 0.0
    %447 = vmatpush1.msra.mxu0 %v421
    %448 = vmatprep.subr.mxu0 0.0
    %449 = vmatpush1.msra.mxu0 %v422
    %450 = vmatprep.subr.mxu0 0.0
    %451 = vmatpush1.msra.mxu0 %v423
    %452 = vmatprep.subr.mxu0 0.0
    %453 = vmatpush1.msra.mxu0 %v424
    %454 = vmatprep.subr.mxu0 0.0
    %455 = vmatpush1.msra.mxu0 %v425
    %456 = vmatprep.subr.mxu0 0.0
    %457 = vmatpush1.msra.mxu0 %v426
    %458 = vmatprep.subr.mxu0 0.0
    %459 = vmatpush1.msra.mxu0 %v427
    %460 = vmatprep.subr.mxu0 0.0
    %461 = vmatpush1.msra.mxu0 %v428
    %462 = vmatprep.subr.mxu0 0.0
    %463 = vmatpush1.msra.mxu0 %v429
    %464 = vmatprep.subr.mxu0 0.0
    %465 = vmatpush1.msra.mxu0 %v430
    %466 = vmatprep.subr.mxu0 0.0
    %467 = vmatpush1.msra.mxu0 %v431
    %468 = vmatprep.subr.mxu0 0.0
    %469 = vmatpush1.msra.mxu0 0.0
    %470 = vmatprep.subr.mxu0 0.0
    %471 = vmatpush1.msra.mxu0 0.0
    %472 = vmatprep.subr.mxu0 0.0
    %473 = vmatpush1.msra.mxu0 0.0
    %474 = vmatprep.subr.mxu0 0.0
    %475 = vmatpush1.msra.mxu0 0.0
    %476 = vmatprep.subr.mxu0 0.0
    %477 = vmatpush1.msra.mxu0 0.0
    %478 = vmatprep.subr.mxu0 0.0
    %479 = vmatpush1.msra.mxu0 0.0
    %480 = vmatprep.subr.mxu0 0.0
    %481 = vmatpush1.msra.mxu0 0.0
    %482 = vmatprep.subr.mxu0 0.0
    %483 = vmatpush1.msra.mxu0 0.0
    %484 = vmatprep.subr.mxu0 0.0
    %485 = vmatpush1.msra.mxu0 0.0
    %486 = vmatprep.subr.mxu0 0.0
    %487 = vmatpush1.msra.mxu0 0.0
    %488 = vmatprep.subr.mxu0 0.0
    %489 = vmatpush1.msra.mxu0 0.0
    %490 = vmatprep.subr.mxu0 0.0
    %491 = vmatpush1.msra.mxu0 0.0
    %492 = vmatprep.subr.mxu0 0.0
    %493 = vmatpush1.msra.mxu0 0.0
    %494 = vmatprep.subr.mxu0 0.0
    %495 = vmatpush1.msra.mxu0 0.0
    %496 = vmatprep.subr.mxu0 0.0
    %497 = vmatpush1.msra.mxu0 0.0
    %498 = vmatprep.subr.mxu0 0.0
    %499 = vmatpush1.msra.mxu0 0.0
    %500 = vmatprep.mubr.f32.mxu0 0.0
    %501 = vmatmul.mubr.f32.gmra.mrb[0].mxu0 %v415
    %v502 = vpop.f32.mrb[0].mxu0
    %v503 = vadd.f32 %v435, %v502
    %v504 = vpop.f32.mrb[0].mxu0
    %505 = vdwg.mxu0
    %506 = vst [vmem:[#allocation11] sm:$0xff] %v503
    // Predicated region
    $region46: #{tpu_custom_call.1} parent=1 // pred_check
      _
    $region47: #{tpu_custom_call.1} parent=1 // pred_check_branch
      %508 = sbr.rel (0) target = $region49
    $region48: #{tpu_custom_call.1} parent=1 // pred_region
      %s510 = ssub.s32 128, 32
      %511 = vsyncadd [#allocation4], %s510
      %s512 = sshll.u32 [#allocation11], 4
      %s513 = int_to_ptr.vmem [resolvable:$true] %s512
      %518 = dma.vmem_to_hbm [thread:$0]  %s513, 32, %s6, [#allocation4], 32, 32, 2
    $region49: #{tpu_custom_call.1} parent=1 // pred_fallthru
      _
    // Predicated region
    $region50: #{tpu_custom_call.1} parent=1 // pred_check
      _
    $region51: #{tpu_custom_call.1} parent=1 // pred_check_branch
      %520 = sbr.rel (0) target = $region53
    $region52: #{tpu_custom_call.1} parent=1 // pred_region
      %521 = dma.done [#allocation4], 128
    $region53: #{tpu_custom_call.1} parent=1 // pred_fallthru
      _
    %522 = vsyncpa [#allocation3], 1
    %523 = vsyncpa [#allocation6], 1
    %524 = vsyncpa [#allocation9], 1
    %525 = vsyncpa [#allocation4], 1

</llo_original>
